<compile_context>
chip_gen: v5e
topology: v5e:2x2
jax: 0.10.0
libtpu: 0.0.40
codegen_flags: <defaults>
</compile_context>

<pallas_src>
import functools

import jax
import jax.numpy as jnp
from jax.experimental import pallas as pl
from jax.experimental.pallas import tpu as pltpu

EPS = 1e-5

MIN_PIPELINE_BYTES = 4 * 1024 * 1024   # below this a single block is fine
TARGET_STEPS = 8                       # aim for ~8 grid steps when pipelining


# --------------------------------------------------------------------------- #
# VMEM-aware tile selection
# --------------------------------------------------------------------------- #
def _vmem_capacity_bytes():
    try:
        return int(pltpu.get_tpu_info().vmem_capacity_bytes)
    except Exception:
        # Conservative fallback: v7x per-TensorCore VMEM.
        return 64 * 1024 * 1024


def _vmem_limit_bytes():
    cap = _vmem_capacity_bytes()
    # 3/4 of the chip's per-TC VMEM, capped at 96 MiB (v5e/v6e have 128 MiB).
    return min((cap * 3) // 4, 96 * 1024 * 1024)


def _round_up_128(v):
    return ((int(v) + 127) // 128) * 128


def _round_up_8(v):
    return ((int(v) + 7) // 8) * 8


def _lane_align(tf, f):
    """Clamp tf into [128, f] as a lane-dense tile (full F when F <= 128)."""
    tf = min(int(tf), f)
    if tf >= f:
        return f
    return max(128, (tf // 128) * 128) if f > 128 else f


def _sublane_align(tn, n):
    """Clamp tn into [8, n] as a sublane-aligned tile (full N when N <= 8)."""
    tn = min(int(tn), n)
    if tn >= n:
        return n
    return max(8, (tn // 8) * 8) if n > 8 else n


def _select_single_pass_tf(n, f, itemsize, budget, user_tf=None):
    """F tile width for the single-pass training kernel (full-N column blocks).
    Returns None when a full-N column block does not fit in the VMEM budget."""
    bpe = 4 * itemsize + 12            # x & y double-buffered + f32 temporaries
    tf_fit = budget // max(n * bpe, 1)
    if tf_fit < f and tf_fit < 128:
        return None                    # full batch never fits -> two-pass path
    if user_tf is not None:
        tf = int(user_tf)
    else:
        tf = f
        if n * f * itemsize > MIN_PIPELINE_BYTES and f >= 4 * 128:
            # >=4 (target ~8) lane-dense F tiles: restores DMA/compute overlap
            # and gives both v7x TensorCores work on the parallel axis.
            n_ftiles = min(TARGET_STEPS, max(4, pl.cdiv(f, 2048)))
            tf = _round_up_128(pl.cdiv(f, n_ftiles))
    if tf_fit < f:
        tf = min(tf, tf_fit)           # clamp against the VMEM budget
    return _lane_align(tf, f)


def _select_stats_tiles(n, f, itemsize, budget, user_tn=None, user_tf=None):
    """Tiles for the two-pass stats kernel (full N does not fit as one column)."""
    bpe = 2 * itemsize + 12            # x double-buffered + f32 temporaries
    if user_tf is not None:
        tf = _lane_align(user_tf, f)
    elif f >= 256:
        # Wide lane tiles (long contiguous HBM bursts), but >=2 F tiles so the
        # parallel axis feeds both v7x TensorCores.
        n_ftiles = max(2, pl.cdiv(f, 2048))
        tf = _lane_align(_round_up_128(pl.cdiv(f, n_ftiles)), f)
    else:
        tf = f
    tn = budget // max(tf * bpe, 1)
    if user_tn is not None:
        tn = min(tn, int(user_tn))
    tn = _sublane_align(tn, n)
    return tn, tf


def _select_apply_tiles(n, f, itemsize, budget, user_tn=None, user_tf=None):
    """Tiles for the streaming affine pass (sized independently of the stats pass)."""
    bpe = 4 * itemsize + 8             # x & y double-buffered + one f32 temp
    total = n * f * itemsize
    if (user_tf is None and user_tn is None
            and total <= MIN_PIPELINE_BYTES and n * f * bpe <= budget):
        return n, f                    # tiny input: a single full block
    if user_tf is not None:
        tf = _lane_align(user_tf, f)
    elif f >= 256:
        n_ftiles = min(TARGET_STEPS, max(2, pl.cdiv(f, 2048)))
        tf = _lane_align(_round_up_128(pl.cdiv(f, n_ftiles)), f)
    else:
        tf = f
    n_ftiles = pl.cdiv(f, tf)
    tn = budget // max(tf * bpe, 1)
    if user_tn is not None:
        tn = min(tn, int(user_tn))
    elif total > MIN_PIPELINE_BYTES:
        # Enough grid steps overall (~TARGET_STEPS) so the pipeline overlaps.
        want_ntiles = max(1, pl.cdiv(TARGET_STEPS, n_ftiles))
        if want_ntiles > 1:
            tn = min(tn, max(8, _round_up_8(pl.cdiv(n, want_ntiles))))
    tn = _sublane_align(tn, n)
    return tn, tf


# --------------------------------------------------------------------------- #
# Kernels
# --------------------------------------------------------------------------- #
def _cbn_train_kernel(s_ref, x_ref, rm_ref, rv_ref, y_ref, nrm_ref, nrv_ref):
    """Single-pass training: the whole batch of one F tile is resident in VMEM."""
    x = x_ref[...].astype(jnp.float32)                     # (N, TF)
    mean = jnp.mean(x, axis=0, keepdims=True)              # (1, TF)
    xc = x - mean
    var = jnp.mean(xc * xc, axis=0, keepdims=True)         # biased (unbiased=False)
    scale = jax.lax.rsqrt(var + EPS)
    y_ref[...] = (xc * scale).astype(y_ref.dtype)
    s = s_ref[0]
    nrm_ref[...] = (s * rm_ref[...].astype(jnp.float32)
                    + (1.0 - s) * mean).astype(nrm_ref.dtype)
    nrv_ref[...] = (s * rv_ref[...].astype(jnp.float32)
                    + (1.0 - s) * var).astype(nrv_ref.dtype)


def _cbn_stats_kernel(n_total, tn, s_ref, x_ref, rm_ref, rv_ref,
                      scale_ref, shift_ref, nrm_ref, nrv_ref,
                      mean_acc, m2_acc):
    """Two-pass training, pass 1: chunked (Welford/Chan merge) mean & M2 over N
    tiles. Grid = (F tiles [parallel], N tiles [arbitrary, reduction])."""
    nidx = pl.program_id(1)

    @pl.when(nidx == 0)
    def _():
        mean_acc[...] = jnp.zeros_like(mean_acc)
        m2_acc[...] = jnp.zeros_like(m2_acc)

    x = x_ref[...].astype(jnp.float32)                     # (TN, TF)
    partial_tail = (n_total % tn) != 0
    if partial_tail:
        rows = nidx * tn + jax.lax.broadcasted_iota(jnp.int32, x.shape, 0)
        valid = rows < n_total
        x = jnp.where(valid, x, 0.0)
        nb = jnp.minimum(jnp.int32(tn),
                         jnp.int32(n_total) - nidx * tn).astype(jnp.float32)
    else:
        nb = jnp.float32(tn)

    sum_b = jnp.sum(x, axis=0, keepdims=True)
    mean_b = sum_b / nb
    xc = x - mean_b
    if partial_tail:
        xc = jnp.where(valid, xc, 0.0)
    m2_b = jnp.sum(xc * xc, axis=0, keepdims=True)

    # Chunk merge (numerically stable even when |mean| >> std).
    na = (nidx * tn).astype(jnp.float32)
    n_new = na + nb
    delta = mean_b - mean_acc[...]
    mean_acc[...] = mean_acc[...] + delta * (nb / n_new)
    m2_acc[...] = m2_acc[...] + m2_b + delta * delta * (na * nb / n_new)

    @pl.when(nidx == pl.num_programs(1) - 1)
    def _():
        mean = mean_acc[...]
        var = m2_acc[...] * jnp.float32(1.0 / n_total)     # biased (unbiased=False)
        scale = jax.lax.rsqrt(var + EPS)
        scale_ref[...] = scale
        shift_ref[...] = -mean * scale
        s = s_ref[0]
        nrm_ref[...] = (s * rm_ref[...].astype(jnp.float32)
                        + (1.0 - s) * mean).astype(nrm_ref.dtype)
        nrv_ref[...] = (s * rv_ref[...].astype(jnp.float32)
                        + (1.0 - s) * var).astype(nrv_ref.dtype)


def _apply_affine_kernel(x_ref, scale_ref, shift_ref, y_ref):
    """Pure streaming FMA: y = x * scale + shift (scale/shift precomputed)."""
    y = x_ref[...].astype(jnp.float32) * scale_ref[...] + shift_ref[...]
    y_ref[...] = y.astype(y_ref.dtype)


# --------------------------------------------------------------------------- #
# Wrappers
# --------------------------------------------------------------------------- #
def _apply_affine(x, scale_1f, shift_1f, tn, tf, vmem_limit):
    n, f = x.shape
    # F outer (parallel across TensorCores; the (1, tf) stats rows are fetched
    # once per F tile), N inner (streams down the batch, pipelined).
    x_spec = pl.BlockSpec((tn, tf), lambda j, i: (i, j))
    row_spec = pl.BlockSpec((1, tf), lambda j, i: (0, j))
    return pl.pallas_call(
        _apply_affine_kernel,
        out_shape=jax.ShapeDtypeStruct((n, f), x.dtype),
        grid=(pl.cdiv(f, tf), pl.cdiv(n, tn)),
        in_specs=[x_spec, row_spec, row_spec],
        out_specs=x_spec,
        compiler_params=pltpu.CompilerParams(
            dimension_semantics=("parallel", "parallel"),
            vmem_limit_bytes=vmem_limit),
    )(x, scale_1f, shift_1f)


def _train_single_pass(x, rm, rv, s, tf, vmem_limit):
    n, f = x.shape
    x_spec = pl.BlockSpec((n, tf), lambda j: (0, j))
    r_spec = pl.BlockSpec((1, tf), lambda j: (0, j))
    y, nrm, nrv = pl.pallas_call(
        _cbn_train_kernel,
        out_shape=(
            jax.ShapeDtypeStruct((n, f), x.dtype),
            jax.ShapeDtypeStruct((1, f), rm.dtype),
            jax.ShapeDtypeStruct((1, f), rv.dtype),
        ),
        grid=(pl.cdiv(f, tf),),
        in_specs=[pl.BlockSpec(memory_space=pltpu.MemorySpace.SMEM),
                  x_spec, r_spec, r_spec],
        out_specs=(x_spec, r_spec, r_spec),
        compiler_params=pltpu.CompilerParams(
            dimension_semantics=("parallel",),
            vmem_limit_bytes=vmem_limit),
    )(s, x, rm, rv)
    return y, nrm.reshape(f), nrv.reshape(f)


def _train_two_pass(x, rm, rv, s, tn, tf, vmem_limit):
    n, f = x.shape
    x_spec = pl.BlockSpec((tn, tf), lambda j, i: (i, j))
    row_spec = pl.BlockSpec((1, tf), lambda j, i: (0, j))
    kernel = functools.partial(_cbn_stats_kernel, n, tn)
    scale, shift, nrm, nrv = pl.pallas_call(
        kernel,
        out_shape=(
            jax.ShapeDtypeStruct((1, f), jnp.float32),   # scale = rsqrt(var+eps)
            jax.ShapeDtypeStruct((1, f), jnp.float32),   # shift = -mean*scale
            jax.ShapeDtypeStruct((1, f), rm.dtype),
            jax.ShapeDtypeStruct((1, f), rv.dtype),
        ),
        grid=(pl.cdiv(f, tf), pl.cdiv(n, tn)),           # reduction (N) innermost
        in_specs=[pl.BlockSpec(memory_space=pltpu.MemorySpace.SMEM),
                  x_spec, row_spec, row_spec],
        out_specs=(row_spec, row_spec, row_spec, row_spec),
        scratch_shapes=[pltpu.VMEM((1, tf), jnp.float32),
                        pltpu.VMEM((1, tf), jnp.float32)],
        compiler_params=pltpu.CompilerParams(
            dimension_semantics=("parallel", "arbitrary"),
            vmem_limit_bytes=vmem_limit),
    )(s, x, rm, rv)
    # Second (apply) pass gets its own, larger tiles — it has no full-N constraint.
    itemsize = jnp.dtype(x.dtype).itemsize
    a_tn, a_tf = _select_apply_tiles(n, f, itemsize, vmem_limit)
    y = _apply_affine(x, scale, shift, a_tn, a_tf, vmem_limit)
    return y, nrm.reshape(f), nrv.reshape(f)


def cross_batch_norm_train(x, running_mean, running_var, smoothing=0.9, *,
                           force_two_pass=False, tile_n=None, tile_f=None):
    """x: (N, F). Returns (x_normalized, new_running_mean, new_running_var)."""
    n, f = x.shape
    rm = running_mean.reshape(1, f)
    rv = running_var.reshape(1, f)
    s = jnp.asarray([smoothing], dtype=jnp.float32)
    itemsize = jnp.dtype(x.dtype).itemsize
    vmem_limit = _vmem_limit_bytes()
    if not force_two_pass and (tile_n is None or tile_n >= n):
        tf = _select_single_pass_tf(n, f, itemsize, vmem_limit, user_tf=tile_f)
        if tf is not None:
            return _train_single_pass(x, rm, rv, s, tf, vmem_limit)
    tn, tf = _select_stats_tiles(n, f, itemsize, vmem_limit,
                                 user_tn=tile_n, user_tf=tile_f)
    return _train_two_pass(x, rm, rv, s, tn, tf, vmem_limit)


def cross_batch_norm_eval(x, running_mean, running_var, *, tile_n=None, tile_f=None):
    """x: (N, F). Returns x normalized with the running stats (eval branch)."""
    n, f = x.shape
    itemsize = jnp.dtype(x.dtype).itemsize
    vmem_limit = _vmem_limit_bytes()
    tn, tf = _select_apply_tiles(n, f, itemsize, vmem_limit,
                                 user_tn=tile_n, user_tf=tile_f)
    # Tiny (F,)-sized precomputation of scale/shift; the (N, F) stream stays in
    # the Pallas kernel as a pure x*scale + shift FMA.
    var32 = running_var.astype(jnp.float32).reshape(1, f)
    scale = jax.lax.rsqrt(var32 + EPS)
    shift = (-running_mean.astype(jnp.float32).reshape(1, f)) * scale
    return _apply_affine(x, scale, shift, tn, tf, vmem_limit)


# --------------------------------------------------------------------------- #
# Self-test
# --------------------------------------------------------------------------- #
if __name__ == "__main__":
    key = jax.random.PRNGKey(0)
    batch, num_features = 16, 384
    x = jax.random.normal(key, (batch, num_features), dtype=jnp.float32) * 2.0 + 0.5

    # Deterministic buffer init, matching the module __init__.
    running_mean = jnp.zeros((num_features,), jnp.float32)
    running_var = jnp.ones((num_features,), jnp.float32)
    smoothing = 0.9

    # Pure-JAX reference (training branch).
    bm = jnp.mean(x, axis=0)
    bv = jnp.mean((x - bm) ** 2, axis=0)               # unbiased=False
    y_ref = (x - bm) / jnp.sqrt(bv + EPS)
    nrm_ref = smoothing * running_mean + (1 - smoothing) * bm
    nrv_ref = smoothing * running_var + (1 - smoothing) * bv

    # 1) Default path (single pass, auto tile sizes).
    y, nrm, nrv = cross_batch_norm_train(x, running_mean, running_var, smoothing)
    jax.block_until_ready((y, nrm, nrv))
    assert jnp.allclose(y, y_ref, atol=1e-5, rtol=1e-5)
    assert jnp.allclose(nrm, nrm_ref, atol=1e-6, rtol=1e-6)
    assert jnp.allclose(nrv, nrv_ref, atol=1e-6, rtol=1e-6)

    # 2) Single pass with multiple 128-lane F tiles (exercises the pipelined grid).
    y2, nrm2, nrv2 = cross_batch_norm_train(x, running_mean, running_var, smoothing,
                                            tile_f=128)
    jax.block_until_ready((y2, nrm2, nrv2))
    assert jnp.allclose(y2, y_ref, atol=1e-5, rtol=1e-5)
    assert jnp.allclose(nrm2, nrm_ref, atol=1e-6, rtol=1e-6)
    assert jnp.allclose(nrv2, nrv_ref, atol=1e-6, rtol=1e-6)

    # 3) Two-pass large-batch path (forced; N not a multiple of TN -> masking,
    #    chunked Welford merge, separate apply-pass tiles).
    x3 = x[:12]
    bm3 = jnp.mean(x3, axis=0)
    bv3 = jnp.mean((x3 - bm3) ** 2, axis=0)
    y3_ref = (x3 - bm3) / jnp.sqrt(bv3 + EPS)
    nrm3_ref = smoothing * running_mean + (1 - smoothing) * bm3
    nrv3_ref = smoothing * running_var + (1 - smoothing) * bv3
    y3, nrm3, nrv3 = cross_batch_norm_train(
        x3, running_mean, running_var, smoothing,
        force_two_pass=True, tile_n=8, tile_f=128)
    jax.block_until_ready((y3, nrm3, nrv3))
    assert jnp.allclose(y3, y3_ref, atol=1e-4, rtol=1e-4)
    assert jnp.allclose(nrm3, nrm3_ref, atol=1e-5, rtol=1e-5)
    assert jnp.allclose(nrv3, nrv3_ref, atol=1e-4, rtol=1e-4)

    # 4) F not a multiple of 128 with a partial last F tile (masked writeback).
    num_features4 = 200
    x4 = jax.random.normal(jax.random.PRNGKey(1), (batch, num_features4),
                           dtype=jnp.float32) * 1.5 - 0.25
    rm4 = jnp.zeros((num_features4,), jnp.float32)
    rv4 = jnp.ones((num_features4,), jnp.float32)
    bm4 = jnp.mean(x4, axis=0)
    bv4 = jnp.mean((x4 - bm4) ** 2, axis=0)
    y4_ref = (x4 - bm4) / jnp.sqrt(bv4 + EPS)
    nrm4_ref = smoothing * rm4 + (1 - smoothing) * bm4
    nrv4_ref = smoothing * rv4 + (1 - smoothing) * bv4
    y4, nrm4, nrv4 = cross_batch_norm_train(x4, rm4, rv4, smoothing, tile_f=128)
    jax.block_until_ready((y4, nrm4, nrv4))
    assert jnp.allclose(y4, y4_ref, atol=1e-5, rtol=1e-5)
    assert jnp.allclose(nrm4, nrm4_ref, atol=1e-6, rtol=1e-6)
    assert jnp.allclose(nrv4, nrv4_ref, atol=1e-6, rtol=1e-6)

    # 5) Eval-mode forward.
    y_eval = cross_batch_norm_eval(x, nrm, nrv)
    jax.block_until_ready(y_eval)
    y_eval_ref = (x - nrm_ref) / jnp.sqrt(nrv_ref + EPS)
    assert jnp.allclose(y_eval, y_eval_ref, atol=1e-5, rtol=1e-5)

    print("KERNEL_OK")
</pallas_src>

<mosaic_0001>
module attributes {stable_mosaic.version = 11 : i64} {
  func.func @_cbn_train_kernel(%arg0: i32, %arg1: memref<1xf32, #tpu.memory_space<smem>>, %arg2: memref<16x384xf32, #tpu.memory_space<vmem>>, %arg3: memref<1x384xf32, #tpu.memory_space<vmem>>, %arg4: memref<1x384xf32, #tpu.memory_space<vmem>>, %arg5: memref<16x384xf32, #tpu.memory_space<vmem>>, %arg6: memref<1x384xf32, #tpu.memory_space<vmem>>, %arg7: memref<1x384xf32, #tpu.memory_space<vmem>>) attributes {dimension_semantics = [#tpu.dimension_semantics<parallel>], iteration_bounds = array<i64: 1>, scalar_prefetch = 0 : i64, scratch_operands = 0 : i64, tpu.core_type = #tpu.core_type<tc>, window_params = [{transform_indices = @transform_0, window_bounds = array<i64: 1>}, {transform_indices = @transform_1, window_bounds = array<i64: 16, 384>}, {transform_indices = @transform_2, window_bounds = array<i64: 1, 384>}, {transform_indices = @transform_3, window_bounds = array<i64: 1, 384>}, {transform_indices = @transform_4, window_bounds = array<i64: 16, 384>}, {transform_indices = @transform_5, window_bounds = array<i64: 1, 384>}, {transform_indices = @transform_6, window_bounds = array<i64: 1, 384>}]} {
    %c0 = arith.constant 0 : index
    %c0_0 = arith.constant 0 : index
    %0 = vector.load %arg2[%c0, %c0_0] : memref<16x384xf32, #tpu.memory_space<vmem>>, vector<16x384xf32>
    %cst = arith.constant dense<0.000000e+00> : vector<384xf32>
    %1 = vector.multi_reduction <add>, %0, %cst [0] : vector<16x384xf32> to vector<384xf32>
    %2 = vector.shape_cast %1 : vector<384xf32> to vector<1x384xf32>
    %cst_1 = arith.constant 1.600000e+01 : f32
    %3 = vector.broadcast %cst_1 : f32 to vector<1x384xf32>
    %4 = arith.divf %2, %3 : vector<1x384xf32>
    %5 = vector.broadcast %4 : vector<1x384xf32> to vector<16x384xf32>
    %6 = arith.subf %0, %5 : vector<16x384xf32>
    %7 = arith.mulf %6, %6 : vector<16x384xf32>
    %cst_2 = arith.constant dense<0.000000e+00> : vector<384xf32>
    %8 = vector.multi_reduction <add>, %7, %cst_2 [0] : vector<16x384xf32> to vector<384xf32>
    %9 = vector.shape_cast %8 : vector<384xf32> to vector<1x384xf32>
    %cst_3 = arith.constant 1.600000e+01 : f32
    %10 = vector.broadcast %cst_3 : f32 to vector<1x384xf32>
    %11 = arith.divf %9, %10 : vector<1x384xf32>
    %cst_4 = arith.constant 9.99999974E-6 : f32
    %12 = vector.broadcast %cst_4 : f32 to vector<1x384xf32>
    %13 = arith.addf %11, %12 : vector<1x384xf32>
    %14 = math.rsqrt %13 : vector<1x384xf32>
    %15 = vector.broadcast %14 : vector<1x384xf32> to vector<16x384xf32>
    %16 = arith.mulf %6, %15 : vector<16x384xf32>
    %c0_5 = arith.constant 0 : index
    %c0_6 = arith.constant 0 : index
    %17 = vector.load %arg5[%c0_5, %c0_6] : memref<16x384xf32, #tpu.memory_space<vmem>>, vector<16x384xf32>
    tpu.vector_store %arg5[%c0_5, %c0_6], %16 {strides = array<i32>} : memref<16x384xf32, #tpu.memory_space<vmem>>, vector<16x384xf32>,
    %c0_7 = arith.constant 0 : index
    %18 = memref.load %arg1[%c0_7] : memref<1xf32, #tpu.memory_space<smem>>
    %c0_8 = arith.constant 0 : index
    %c0_9 = arith.constant 0 : index
    %19 = vector.load %arg3[%c0_8, %c0_9] : memref<1x384xf32, #tpu.memory_space<vmem>>, vector<1x384xf32>
    %20 = vector.broadcast %18 : f32 to vector<1x384xf32>
    %21 = arith.mulf %20, %19 : vector<1x384xf32>
    %cst_10 = arith.constant 1.000000e+00 : f32
    %22 = arith.subf %cst_10, %18 : f32
    %23 = vector.broadcast %22 : f32 to vector<1x384xf32>
    %24 = arith.mulf %23, %4 : vector<1x384xf32>
    %25 = arith.addf %21, %24 : vector<1x384xf32>
    %c0_11 = arith.constant 0 : index
    %c0_12 = arith.constant 0 : index
    %26 = vector.load %arg6[%c0_11, %c0_12] : memref<1x384xf32, #tpu.memory_space<vmem>>, vector<1x384xf32>
    tpu.vector_store %arg6[%c0_11, %c0_12], %25 {strides = array<i32>} : memref<1x384xf32, #tpu.memory_space<vmem>>, vector<1x384xf32>,
    %c0_13 = arith.constant 0 : index
    %c0_14 = arith.constant 0 : index
    %27 = vector.load %arg4[%c0_13, %c0_14] : memref<1x384xf32, #tpu.memory_space<vmem>>, vector<1x384xf32>
    %28 = vector.broadcast %18 : f32 to vector<1x384xf32>
    %29 = arith.mulf %28, %27 : vector<1x384xf32>
    %cst_15 = arith.constant 1.000000e+00 : f32
    %30 = arith.subf %cst_15, %18 : f32
    %31 = vector.broadcast %30 : f32 to vector<1x384xf32>
    %32 = arith.mulf %31, %11 : vector<1x384xf32>
    %33 = arith.addf %29, %32 : vector<1x384xf32>
    %c0_16 = arith.constant 0 : index
    %c0_17 = arith.constant 0 : index
    %34 = vector.load %arg7[%c0_16, %c0_17] : memref<1x384xf32, #tpu.memory_space<vmem>>, vector<1x384xf32>
    tpu.vector_store %arg7[%c0_16, %c0_17], %33 {strides = array<i32>} : memref<1x384xf32, #tpu.memory_space<vmem>>, vector<1x384xf32>,
    return
  }
  func.func @transform_0(%arg0: i32) -> i32 {
    %c0_i32 = arith.constant 0 : i32
    %c0_i32_0 = arith.constant 0 : i32
    return %c0_i32 : i32
  }
  func.func @transform_1(%arg0: i32) -> (i32, i32) {
    %c0_i32 = arith.constant 0 : i32
    %c0_i32_0 = arith.constant 0 : i32
    return %c0_i32, %arg0 : i32, i32
  }
  func.func @transform_2(%arg0: i32) -> (i32, i32) {
    %c0_i32 = arith.constant 0 : i32
    %c0_i32_0 = arith.constant 0 : i32
    return %c0_i32, %arg0 : i32, i32
  }
  func.func @transform_3(%arg0: i32) -> (i32, i32) {
    %c0_i32 = arith.constant 0 : i32
    %c0_i32_0 = arith.constant 0 : i32
    return %c0_i32, %arg0 : i32, i32
  }
  func.func @transform_4(%arg0: i32) -> (i32, i32) {
    %c0_i32 = arith.constant 0 : i32
    %c0_i32_0 = arith.constant 0 : i32
    return %c0_i32, %arg0 : i32, i32
  }
  func.func @transform_5(%arg0: i32) -> (i32, i32) {
    %c0_i32 = arith.constant 0 : i32
    %c0_i32_0 = arith.constant 0 : i32
    return %c0_i32, %arg0 : i32, i32
  }
  func.func @transform_6(%arg0: i32) -> (i32, i32) {
    %c0_i32 = arith.constant 0 : i32
    %c0_i32_0 = arith.constant 0 : i32
    return %c0_i32, %arg0 : i32, i32
  }
}

</mosaic_0001>

<llo_original>
// kernel: tpu_custom_call.1
$region0: #{tpu_custom_call.1}
  #allocation0 [shape = 'u32[]', space=smem, size = 0x4, offset = 0x4, fixed_abs, tag = 'smem constant byte address 0x4 - core index']
  #allocation1 [shape = 'u32[72,128]{1,0:T(1,128)}', space=vmem, size = 0x9000, scoped, tag = 'internal scratch']
  #allocation2 [shape = 'f32[1]{0:T(128)S(6)}', space=smem, size = 0x200, scoped, tag = 'scoped memory for tpu_custom_call.1']
  %s0 = inlined_call_operand.<no memory space> [shape: f32[1], index: 0, kind: input, shape index: {}]
  %s1 = inlined_call_operand.hbm [shape: f32[16,384], index: 1, kind: input, shape index: {}]
  %s2 = inlined_call_operand.hbm [shape: f32[1,384], index: 2, kind: input, shape index: {}]
  %s3 = inlined_call_operand.vmem [shape: f32[1,384], index: 3, kind: input, shape index: {}]
  %s4 = inlined_call_operand.hbm [shape: f32[16,384], index: 4, kind: output, shape index: {0}]
  %s5 = inlined_call_operand.hbm [shape: f32[1,384], index: 5, kind: output, shape index: {1}]
  %s6 = inlined_call_operand.hbm [shape: f32[1,384], index: 6, kind: output, shape index: {2}]
  %7 = xla_tuple %s4, %s5, %s6
  %s8 = sld [smem:[#allocation0]]
  $region50: #{tpu_custom_call.1} parent=0
    _
  %s10 = ssub.s32 1, %s8
  %s11 = scalar_select 0, %s10, %s8
  %12 = sst [smem:[#allocation2]] %s0
  $region1: #{tpu_custom_call.1} parent=0
    #allocation3 [shape = 'u8[24576]{0}', space=vmem, size = 0x6000, scoped, tag = 'input window, operand 1, single buffered']
    #allocation4 [shape = 's32[1]{0}', space=sflag, size = 0x4, scoped, tag = 'scoped memory for tpu_custom_call.1']
    #allocation5 [shape = 's32[1]{0}', space=sflag, size = 0x4, scoped, tag = 'scoped memory for tpu_custom_call.1']
    #allocation6 [shape = 'u8[1536]{0}', space=vmem, size = 0x800, scoped, tag = 'input window, operand 2, single buffered']
    #allocation7 [shape = 's32[1]{0}', space=sflag, size = 0x4, scoped, tag = 'scoped memory for tpu_custom_call.1']
    #allocation8 [shape = 'u8[24576]{0}', space=vmem, size = 0x6000, scoped, tag = 'output window, operand 0, single buffered']
    #allocation9 [shape = 'u8[1536]{0}', space=vmem, size = 0x800, scoped, tag = 'output window, operand 1, single buffered']
    #allocation10 [shape = 's32[1]{0}', space=sflag, size = 0x4, scoped, tag = 'scoped memory for tpu_custom_call.1']
    #allocation11 [shape = 'u8[1536]{0}', space=vmem, size = 0x800, scoped, tag = 'output window, operand 2, single buffered']
    %13 = vsyncpa [#allocation4], 0
    %14 = vsyncpa [#allocation7], 0
    %15 = vsyncpa [#allocation5], 0
    %16 = vsyncpa [#allocation10], 0
    // Predicated region
    $region2: #{tpu_custom_call.1} parent=1 // pred_check
      _
    $region3: #{tpu_custom_call.1} parent=1 // pred_check_branch
      %18 = sbr.rel (0) target = $region5
    $region4: #{tpu_custom_call.1} parent=1 // pred_region
      _
    $region5: #{tpu_custom_call.1} parent=1 // pred_fallthru
      _
    // Predicated region
    $region6: #{tpu_custom_call.1} parent=1 // pred_check
      _
    $region7: #{tpu_custom_call.1} parent=1 // pred_check_branch
      %20 = sbr.rel (0) target = $region9
    $region8: #{tpu_custom_call.1} parent=1 // pred_region
      %22 = vsyncadd [#allocation4], 0
      %s23 = sshll.u32 %s1, 4
      %s24 = int_to_ptr.hbm [resolvable:$true] %s23
      %s25 = sshll.u32 [#allocation3], 4
      %s26 = int_to_ptr.vmem [resolvable:$true] %s25
      %31 = dma.hbm_to_vmem [thread:$0]  %s24, 768, %s26, [#allocation4], 384, 384, 24
    $region9: #{tpu_custom_call.1} parent=1 // pred_fallthru
      _
    // Predicated region
    $region10: #{tpu_custom_call.1} parent=1 // pred_check
      _
    $region11: #{tpu_custom_call.1} parent=1 // pred_check_branch
      %33 = sbr.rel (0) target = $region13
    $region12: #{tpu_custom_call.1} parent=1 // pred_region
      %35 = vsyncadd [#allocation7], 0
      %s37 = sshll.u32 %s2, 4
      %s38 = int_to_ptr.hbm [resolvable:$true] %s37
      %s39 = sshll.u32 [#allocation6], 4
      %s40 = int_to_ptr.vmem [resolvable:$true] %s39
      %42 = dma.hbm_to_vmem [thread:$0]  %s38, 48, %s40, [#allocation7]
    $region13: #{tpu_custom_call.1} parent=1 // pred_fallthru
      _
    // Predicated region
    $region14: #{tpu_custom_call.1} parent=1 // pred_check
      _
    $region15: #{tpu_custom_call.1} parent=1 // pred_check_branch
      %44 = sbr.rel (0) target = $region17
    $region16: #{tpu_custom_call.1} parent=1 // pred_region
      _
    $region17: #{tpu_custom_call.1} parent=1 // pred_fallthru
      _
    // Predicated region
    $region18: #{tpu_custom_call.1} parent=1 // pred_check
      _
    $region19: #{tpu_custom_call.1} parent=1 // pred_check_branch
      %46 = sbr.rel (0) target = $region21
    $region20: #{tpu_custom_call.1} parent=1 // pred_region
      %48 = dma.done [#allocation4], 768
    $region21: #{tpu_custom_call.1} parent=1 // pred_fallthru
      _
    // Predicated region
    $region22: #{tpu_custom_call.1} parent=1 // pred_check
      _
    $region23: #{tpu_custom_call.1} parent=1 // pred_check_branch
      %50 = sbr.rel (0) target = $region25
    $region24: #{tpu_custom_call.1} parent=1 // pred_region
      %52 = dma.done [#allocation7], 48
    $region25: #{tpu_custom_call.1} parent=1 // pred_fallthru
      _
    %v53 = vld [vmem:[#allocation3] sm:$0xff]
    %v54 = vld [vmem:[#allocation3 + $0x8] sm:$0xff]
    %v55 = vld [vmem:[#allocation3 + $0x10] sm:$0xff]
    %v56 = vld [vmem:[#allocation3 + $0x18] sm:$0xff]
    %v57 = vld [vmem:[#allocation3 + $0x20] sm:$0xff]
    %v58 = vld [vmem:[#allocation3 + $0x28] sm:$0xff]
    %v59 = vadd.f32 %v53, %v56
    %v60 = vrot.slane %v59, 4
    %v61 = vadd.f32 %v59, %v60
    %v62 = vrot.slane %v61, 2
    %v63 = vadd.f32 %v61, %v62
    %v64 = vrot.slane %v63, 1
    %v65 = vadd.f32 %v63, %v64
    %v66 = vadd.f32 %v54, %v57
    %v67 = vrot.slane %v66, 4
    %v68 = vadd.f32 %v66, %v67
    %v69 = vrot.slane %v68, 2
    %v70 = vadd.f32 %v68, %v69
    %v71 = vrot.slane %v70, 1
    %v72 = vadd.f32 %v70, %v71
    %v73 = vadd.f32 %v55, %v58
    %v74 = vrot.slane %v73, 4
    %v75 = vadd.f32 %v73, %v74
    %v76 = vrot.slane %v75, 2
    %v77 = vadd.f32 %v75, %v76
    %v78 = vrot.slane %v77, 1
    %v79 = vadd.f32 %v77, %v78
    %v80 = vrcp.pop 16.0
    %v81 = vmul.f32 16.0, %v80
    %v82 = vsub.f32 1.0, %v81
    %v83 = vmul.f32 %v80, %v82
    %v84 = vadd.f32 %v80, %v83
    %vm85 = vweird.f32 %v80
    %v86 = vsel %vm85, %v80, %v84
    %v87 = vmul.f32 %v65, %v86
    %v88 = vmul.f32 %v72, %v86
    %v89 = vmul.f32 %v79, %v86
    %v90 = vsub.f32 %v53, %v87
    %v91 = vsub.f32 %v54, %v88
    %v92 = vsub.f32 %v55, %v89
    %v93 = vsub.f32 %v56, %v87
    %v94 = vsub.f32 %v57, %v88
    %v95 = vsub.f32 %v58, %v89
    %v96 = vmul.f32 %v90, %v90
    %v97 = vmul.f32 %v91, %v91
    %v98 = vmul.f32 %v92, %v92
    %v99 = vmul.f32 %v93, %v93
    %v100 = vmul.f32 %v94, %v94
    %v101 = vmul.f32 %v95, %v95
    %v102 = vadd.f32 %v96, %v99
    %v103 = vrot.slane %v102, 4
    %v104 = vadd.f32 %v102, %v103
    %v105 = vrot.slane %v104, 2
    %v106 = vadd.f32 %v104, %v105
    %v107 = vrot.slane %v106, 1
    %v108 = vadd.f32 %v106, %v107
    %v109 = vadd.f32 %v97, %v100
    %v110 = vrot.slane %v109, 4
    %v111 = vadd.f32 %v109, %v110
    %v112 = vrot.slane %v111, 2
    %v113 = vadd.f32 %v111, %v112
    %v114 = vrot.slane %v113, 1
    %v115 = vadd.f32 %v113, %v114
    %v116 = vadd.f32 %v98, %v101
    %v117 = vrot.slane %v116, 4
    %v118 = vadd.f32 %v116, %v117
    %v119 = vrot.slane %v118, 2
    %v120 = vadd.f32 %v118, %v119
    %v121 = vrot.slane %v120, 1
    %v122 = vadd.f32 %v120, %v121
    %v123 = vmul.f32 %v108, %v86
    %v124 = vmul.f32 %v115, %v86
    %v125 = vmul.f32 %v122, %v86
    %v126 = vadd.f32 %v123, 1e-05
    %v127 = vadd.f32 %v124, 1e-05
    %v128 = vadd.f32 %v125, 1e-05
    %v129 = vrsqrt.pop %v126
    %v130 = vmul.f32 %v129, %v126
    %v131 = vmul.f32 %v130, %v129
    %v132 = vmul.f32 0.5, %v131
    %v133 = vsub.f32 1.5, %v132
    %v134 = vmul.f32 %v129, %v133
    %vm135 = vweird.f32 %v126
    %vm136 = vweird.f32 %v129
    %vm137 = vmor %vm135, %vm136
    %v138 = vsel %vm137, %v129, %v134
    %v139 = vrsqrt.pop %v127
    %v140 = vmul.f32 %v139, %v127
    %v141 = vmul.f32 %v140, %v139
    %v142 = vmul.f32 0.5, %v141
    %v143 = vsub.f32 1.5, %v142
    %v144 = vmul.f32 %v139, %v143
    %vm145 = vweird.f32 %v127
    %vm146 = vweird.f32 %v139
    %vm147 = vmor %vm145, %vm146
    %v148 = vsel %vm147, %v139, %v144
    %v149 = vrsqrt.pop %v128
    %v150 = vmul.f32 %v149, %v128
    %v151 = vmul.f32 %v150, %v149
    %v152 = vmul.f32 0.5, %v151
    %v153 = vsub.f32 1.5, %v152
    %v154 = vmul.f32 %v149, %v153
    %vm155 = vweird.f32 %v128
    %vm156 = vweird.f32 %v149
    %vm157 = vmor %vm155, %vm156
    %v158 = vsel %vm157, %v149, %v154
    %v159 = vmul.f32 %v90, %v138
    %v160 = vmul.f32 %v91, %v148
    %v161 = vmul.f32 %v92, %v158
    %v162 = vmul.f32 %v93, %v138
    %v163 = vmul.f32 %v94, %v148
    %v164 = vmul.f32 %v95, %v158
    %165 = vst [vmem:[#allocation8] sm:$0xff] %v159
    %166 = vst [vmem:[#allocation8 + $0x8] sm:$0xff] %v160
    %167 = vst [vmem:[#allocation8 + $0x10] sm:$0xff] %v161
    %168 = vst [vmem:[#allocation8 + $0x18] sm:$0xff] %v162
    %169 = vst [vmem:[#allocation8 + $0x20] sm:$0xff] %v163
    %170 = vst [vmem:[#allocation8 + $0x28] sm:$0xff] %v164
    %s171 = sld [smem:[#allocation2]]
    %v172 = vld [vmem:[#allocation6] sm:$0x7]
    %v173 = vstv %s171
    %v174 = vmul.f32 %v173, %v172
    %s175 = ssub.f32 1.0, %s171
    %v176 = vstv %s175
    %v177 = vmul.f32 %v176, %v87
    %v178 = vmul.f32 %v176, %v88
    %v179 = vmul.f32 %v176, %v89
    %v183 = vrot.slane %v178, 7
    %v184 = vrot.slane %v179, 6
    %vm185 = vcmask 1040384
    %v186 = vsel %vm185, %v177, %v183
    %vm187 = vcmask 1041408
    %v188 = vsel %vm187, %v186, %v184
    %v190 = vadd.f32 %v174, %v188
    %v191 = vlaneseq
    %vm192 = vcmp.ge.s32.totalorder %v191, 0
    %vm193 = vcmp.lt.s32.totalorder %v191, 384
    %vm194 = vmand %vm192, %vm193
    %195 = vst.msk [vmem:[#allocation9] sm:$0x7] %vm194, %v190
    %v196 = vld [vmem:[%s3] sm:$0x7]
    %v197 = vmul.f32 %v173, %v196
    %v198 = vmul.f32 %v176, %v123
    %v199 = vmul.f32 %v176, %v124
    %v200 = vmul.f32 %v176, %v125
    %v204 = vrot.slane %v199, 7
    %v205 = vrot.slane %v200, 6
    %v206 = vsel %vm185, %v198, %v204
    %v207 = vsel %vm187, %v206, %v205
    %v209 = vadd.f32 %v197, %v207
    %210 = vst.msk [vmem:[#allocation11] sm:$0x7] %vm194, %v209
    // Predicated region
    $region26: #{tpu_custom_call.1} parent=1 // pred_check
      _
    $region27: #{tpu_custom_call.1} parent=1 // pred_check_branch
      %212 = sbr.rel (0) target = $region29
    $region28: #{tpu_custom_call.1} parent=1 // pred_region
      %214 = vsyncadd [#allocation5], 0
      %s215 = sshll.u32 [#allocation8], 4
      %s216 = int_to_ptr.vmem [resolvable:$true] %s215
      %s217 = sshll.u32 %s4, 4
      %s218 = int_to_ptr.hbm [resolvable:$true] %s217
      %223 = dma.vmem_to_hbm [thread:$0]  %s216, 768, %s218, [#allocation5], 384, 384, 24
    $region29: #{tpu_custom_call.1} parent=1 // pred_fallthru
      _
    // Predicated region
    $region30: #{tpu_custom_call.1} parent=1 // pred_check
      _
    $region31: #{tpu_custom_call.1} parent=1 // pred_check_branch
      %225 = sbr.rel (0) target = $region33
    $region32: #{tpu_custom_call.1} parent=1 // pred_region
      %227 = vsyncadd [#allocation10], 0
      %s229 = sshll.u32 [#allocation9], 4
      %s230 = int_to_ptr.vmem [resolvable:$true] %s229
      %s231 = sshll.u32 %s5, 4
      %s232 = int_to_ptr.hbm [resolvable:$true] %s231
      %234 = dma.vmem_to_hbm [thread:$0]  %s230, 48, %s232, [#allocation10]
    $region33: #{tpu_custom_call.1} parent=1 // pred_fallthru
      _
    // Predicated region
    $region34: #{tpu_custom_call.1} parent=1 // pred_check
      _
    $region35: #{tpu_custom_call.1} parent=1 // pred_check_branch
      %236 = sbr.rel (0) target = $region37
    $region36: #{tpu_custom_call.1} parent=1 // pred_region
      %238 = vsyncadd [#allocation10], 0
      %s240 = sshll.u32 [#allocation11], 4
      %s241 = int_to_ptr.vmem [resolvable:$true] %s240
      %s242 = sshll.u32 %s6, 4
      %s243 = int_to_ptr.hbm [resolvable:$true] %s242
      %245 = dma.vmem_to_hbm [thread:$0]  %s241, 48, %s243, [#allocation10]
    $region37: #{tpu_custom_call.1} parent=1 // pred_fallthru
      _
    // Predicated region
    $region38: #{tpu_custom_call.1} parent=1 // pred_check
      _
    $region39: #{tpu_custom_call.1} parent=1 // pred_check_branch
      %247 = sbr.rel (0) target = $region41
    $region40: #{tpu_custom_call.1} parent=1 // pred_region
      %249 = dma.done [#allocation5], 768
    $region41: #{tpu_custom_call.1} parent=1 // pred_fallthru
      _
    // Predicated region
    $region42: #{tpu_custom_call.1} parent=1 // pred_check
      _
    $region43: #{tpu_custom_call.1} parent=1 // pred_check_branch
      %251 = sbr.rel (0) target = $region45
    $region44: #{tpu_custom_call.1} parent=1 // pred_region
      %253 = dma.done [#allocation10], 48
    $region45: #{tpu_custom_call.1} parent=1 // pred_fallthru
      _
    // Predicated region
    $region46: #{tpu_custom_call.1} parent=1 // pred_check
      _
    $region47: #{tpu_custom_call.1} parent=1 // pred_check_branch
      %255 = sbr.rel (0) target = $region49
    $region48: #{tpu_custom_call.1} parent=1 // pred_region
      %257 = dma.done [#allocation10], 48
    $region49: #{tpu_custom_call.1} parent=1 // pred_fallthru
      _
    %258 = vsyncpa [#allocation4], 1
    %259 = vsyncpa [#allocation7], 1
    %260 = vsyncpa [#allocation5], 1
    %261 = vsyncpa [#allocation10], 1

</llo_original>
